<compile_context>
chip_gen: v5e
topology: v5e:2x2
jax: 0.10.0
libtpu: 0.0.40
codegen_flags: <defaults>
</compile_context>

<pallas_src>
import jax
import jax.numpy as jnp
from jax import lax
from jax.experimental import pallas as pl
from jax.experimental.pallas import tpu as pltpu

C_IN0, C_OUT0, K0 = 80, 20, 3   # LAYER0
C_IN1, C_OUT1, K1 = 20, 80, 3   # LAYER1 (padding=2)
PAD1 = 2


def smallarch_kernel(x_ref, w0_ref, b0_ref, w1_ref, b1_ref, o_ref, hpad_ref):
    # x_ref:    (B_blk, 80, L)   NCL block (L on the 128-lane axis)
    # w0_ref:   (20, 240)        layer0 weights: rows=cout, cols=(k, cin), k-major
    # b0_ref:   (20, 1)
    # w1_ref:   (80, 60)         layer1 weights: rows=cout, cols=(k, cin), k-major
    # b1_ref:   (80, 1)
    # o_ref:    (B_blk, 80, L)
    # hpad_ref: (20, L + 2)      VMEM scratch: layer0 output zero-padded by 2 each side
    b_blk, _, L = x_ref.shape
    L0 = L - (K0 - 1)            # layer0 (valid-conv) output length
    Lp = L0 + 2 * PAD1           # padded layer1 input length (== L + 2)

    w0f = w0_ref[...]            # load weights/biases once per grid step
    w1f = w1_ref[...]
    b0 = b0_ref[...]
    b1 = b1_ref[...]

    # Zero the scratch once per grid step; the middle region is fully overwritten per
    # sample before being read, the 2 pad columns at each end stay zero.
    hpad_ref[...] = jnp.zeros((C_OUT0, Lp), jnp.float32)

    for b in range(b_blk):       # static unroll over the samples in this block
        x_b = x_ref[b]           # (80, L)

        # ---- LAYER0: valid conv, K=3 taps fused into a single matmul ----
        rhs0 = jnp.concatenate([x_b[:, k:k + L0] for k in range(K0)], axis=0)   # (240, L0)
        h = jnp.dot(w0f, rhs0, preferred_element_type=jnp.float32) + b0         # (20, L0)
        h = jnp.maximum(h, 0.0)                                                  # ReLU

        # ---- LAYER1: conv with zero padding=2, taps fused into a single matmul ----
        hpad_ref[:, PAD1:PAD1 + L0] = h
        hp = hpad_ref[...]                                                       # (20, L+2)
        rhs1 = jnp.concatenate([hp[:, k:k + L] for k in range(K1)], axis=0)      # (60, L)
        out = jnp.dot(w1f, rhs1, preferred_element_type=jnp.float32) + b1        # (80, L)
        o_ref[b] = out.astype(o_ref.dtype)


def _pick_batch_block(n, length):
    """Largest divisor of n (<= 8) keeping double-buffered in/out blocks a few MiB."""
    bytes_per_sample = (C_IN0 + C_OUT1) * length * 4
    cap = max(1, min(8, (4 * 1024 * 1024) // max(1, 2 * bytes_per_sample)))
    for b in range(min(cap, n), 0, -1):
        if n % b == 0:
            return b
    return 1


def small_arch_forward(x_ncl, w0, b0, w1, b1):
    """x_ncl: (N, 80, L) float32, PyTorch NCL layout. Returns (N, 80, L) float32."""
    N, C, L = x_ncl.shape
    assert C == C_IN0 and L >= K0, (C, L)
    L0 = L - (K0 - 1)
    L_out = L0 + 2 * PAD1 - (K1 - 1)            # == L for k=3, pad=2

    # Weights as (cout, K*Cin) with k-major columns, matching the in-kernel im2col order.
    w0f = jnp.transpose(w0, (0, 2, 1)).reshape(C_OUT0, K0 * C_IN0)   # (20, 240)
    w1f = jnp.transpose(w1, (0, 2, 1)).reshape(C_OUT1, K1 * C_IN1)   # (80, 60)
    b0c = b0.reshape(C_OUT0, 1)
    b1c = b1.reshape(C_OUT1, 1)

    B_blk = _pick_batch_block(N, L)

    return pl.pallas_call(
        smallarch_kernel,
        out_shape=jax.ShapeDtypeStruct((N, C_OUT1, L_out), jnp.float32),
        grid_spec=pltpu.PrefetchScalarGridSpec(
            num_scalar_prefetch=0,
            grid=(N // B_blk,),
            in_specs=[
                pl.BlockSpec((B_blk, C_IN0, L), lambda n: (n, 0, 0)),
                pl.BlockSpec((C_OUT0, K0 * C_IN0), lambda n: (0, 0)),
                pl.BlockSpec((C_OUT0, 1), lambda n: (0, 0)),
                pl.BlockSpec((C_OUT1, K1 * C_IN1), lambda n: (0, 0)),
                pl.BlockSpec((C_OUT1, 1), lambda n: (0, 0)),
            ],
            out_specs=pl.BlockSpec((B_blk, C_OUT1, L_out), lambda n: (n, 0, 0)),
            scratch_shapes=[pltpu.VMEM((C_OUT0, L0 + 2 * PAD1), jnp.float32)],
        ),
        compiler_params=pltpu.CompilerParams(
            dimension_semantics=("parallel",)),
    )(x_ncl, w0f, b0c, w1f, b1c)


def ref_forward(x, w0, b0, w1, b1):
    """Pure-JAX reference matching PyTorch Conv1d semantics (NCL)."""
    dn = ("NCH", "OIH", "NCH")
    y = lax.conv_general_dilated(x, w0, (1,), [(0, 0)], dimension_numbers=dn)
    y = y + b0[None, :, None]
    y = jnp.maximum(y, 0.0)
    y = lax.conv_general_dilated(y, w1, (1,), [(PAD1, PAD1)], dimension_numbers=dn)
    return y + b1[None, :, None]


if __name__ == "__main__":
    key = jax.random.PRNGKey(0)
    k_x, k_w0, k_b0, k_w1, k_b1 = jax.random.split(key, 5)

    N, L = 2, 16
    x = jax.random.normal(k_x, (N, C_IN0, L), jnp.float32)

    # Deterministic PyTorch-style uniform(-1/sqrt(fan_in), 1/sqrt(fan_in)) init.
    bound0 = 1.0 / (C_IN0 * K0) ** 0.5
    w0 = jax.random.uniform(k_w0, (C_OUT0, C_IN0, K0), jnp.float32, -bound0, bound0)
    b0 = jax.random.uniform(k_b0, (C_OUT0,), jnp.float32, -bound0, bound0)
    bound1 = 1.0 / (C_IN1 * K1) ** 0.5
    w1 = jax.random.uniform(k_w1, (C_OUT1, C_IN1, K1), jnp.float32, -bound1, bound1)
    b1 = jax.random.uniform(k_b1, (C_OUT1,), jnp.float32, -bound1, bound1)

    out = jax.block_until_ready(small_arch_forward(x, w0, b0, w1, b1))
    ref = jax.block_until_ready(ref_forward(x, w0, b0, w1, b1))

    assert out.shape == (N, C_OUT1, L), out.shape
    assert jnp.allclose(out, ref, atol=1e-4, rtol=1e-4), float(jnp.max(jnp.abs(out - ref)))
    print("KERNEL_OK")
</pallas_src>

<mosaic_0001>
module attributes {stable_mosaic.version = 11 : i64} {
  func.func @smallarch_kernel(%arg0: i32, %arg1: memref<2x80x16xf32, #tpu.memory_space<vmem>>, %arg2: memref<20x240xf32, #tpu.memory_space<vmem>>, %arg3: memref<20x1xf32, #tpu.memory_space<vmem>>, %arg4: memref<80x60xf32, #tpu.memory_space<vmem>>, %arg5: memref<80x1xf32, #tpu.memory_space<vmem>>, %arg6: memref<2x80x16xf32, #tpu.memory_space<vmem>>, %arg7: memref<20x18xf32, #tpu.memory_space<vmem>>) attributes {dimension_semantics = [#tpu.dimension_semantics<parallel>], iteration_bounds = array<i64: 1>, scalar_prefetch = 0 : i64, scratch_operands = 1 : i64, tpu.core_type = #tpu.core_type<tc>, window_params = [{transform_indices = @transform_0, window_bounds = array<i64: 2, 80, 16>}, {pipeline_mode = #tpu.pipeline_mode<synchronous>, transform_indices = @transform_1, window_bounds = array<i64: 20, 240>}, {pipeline_mode = #tpu.pipeline_mode<synchronous>, transform_indices = @transform_2, window_bounds = array<i64: 20, 1>}, {pipeline_mode = #tpu.pipeline_mode<synchronous>, transform_indices = @transform_3, window_bounds = array<i64: 80, 60>}, {pipeline_mode = #tpu.pipeline_mode<synchronous>, transform_indices = @transform_4, window_bounds = array<i64: 80, 1>}, {transform_indices = @transform_5, window_bounds = array<i64: 2, 80, 16>}]} {
    %c0 = arith.constant 0 : index
    %c0_0 = arith.constant 0 : index
    %0 = vector.load %arg2[%c0, %c0_0] : memref<20x240xf32, #tpu.memory_space<vmem>>, vector<20x240xf32>
    %c0_1 = arith.constant 0 : index
    %c0_2 = arith.constant 0 : index
    %1 = vector.load %arg4[%c0_1, %c0_2] : memref<80x60xf32, #tpu.memory_space<vmem>>, vector<80x60xf32>
    %c0_3 = arith.constant 0 : index
    %c0_4 = arith.constant 0 : index
    %2 = vector.load %arg3[%c0_3, %c0_4] : memref<20x1xf32, #tpu.memory_space<vmem>>, vector<20x1xf32>
    %c0_5 = arith.constant 0 : index
    %c0_6 = arith.constant 0 : index
    %3 = vector.load %arg5[%c0_5, %c0_6] : memref<80x1xf32, #tpu.memory_space<vmem>>, vector<80x1xf32>
    %cst = arith.constant 0.000000e+00 : f32
    %4 = vector.broadcast %cst : f32 to vector<20x18xf32>
    %c0_7 = arith.constant 0 : index
    %c0_8 = arith.constant 0 : index
    %5 = vector.load %arg7[%c0_7, %c0_8] : memref<20x18xf32, #tpu.memory_space<vmem>>, vector<20x18xf32>
    tpu.vector_store %arg7[%c0_7, %c0_8], %4 {strides = array<i32>} : memref<20x18xf32, #tpu.memory_space<vmem>>, vector<20x18xf32>,
    %c0_9 = arith.constant 0 : index
    %c0_10 = arith.constant 0 : index
    %c0_11 = arith.constant 0 : index
    %6 = vector.load %arg1[%c0_9, %c0_10, %c0_11] : memref<2x80x16xf32, #tpu.memory_space<vmem>>, vector<1x80x16xf32>
    %7 = vector.shape_cast %6 : vector<1x80x16xf32> to vector<80x16xf32>
    %8 = vector.extract_strided_slice %7 {offsets = [0, 0], sizes = [80, 14], strides = [1, 1]} : vector<80x16xf32> to vector<80x14xf32>
    %9 = vector.extract_strided_slice %7 {offsets = [0, 1], sizes = [80, 14], strides = [1, 1]} : vector<80x16xf32> to vector<80x14xf32>
    %10 = vector.extract_strided_slice %7 {offsets = [0, 2], sizes = [80, 14], strides = [1, 1]} : vector<80x16xf32> to vector<80x14xf32>
    %11 = tpu.concatenate %8, %9, %10 in 0 : vector<80x14xf32>, vector<80x14xf32>, vector<80x14xf32> -> vector<240x14xf32>
    %cst_12 = arith.constant dense<0.000000e+00> : vector<20x14xf32>
    %12 = tpu.matmul %0, %11, %cst_12 {dimension_numbers = #tpu.dot_dimension_numbers<[1], [0], [0], [1], [0, 0, 1, 1], [], []>} : vector<20x240xf32>, vector<240x14xf32>, vector<20x14xf32> -> vector<20x14xf32>
    %13 = vector.broadcast %2 : vector<20x1xf32> to vector<20x14xf32>
    %14 = arith.addf %12, %13 : vector<20x14xf32>
    %cst_13 = arith.constant 0.000000e+00 : f32
    %15 = vector.broadcast %cst_13 : f32 to vector<20x14xf32>
    %16 = arith.maximumf %14, %15 : vector<20x14xf32>
    %c0_14 = arith.constant 0 : index
    %c2 = arith.constant 2 : index
    %17 = vector.load %arg7[%c0_14, %c2] : memref<20x18xf32, #tpu.memory_space<vmem>>, vector<20x14xf32>
    tpu.vector_store %arg7[%c0_14, %c2], %16 {strides = array<i32>} : memref<20x18xf32, #tpu.memory_space<vmem>>, vector<20x14xf32>,
    %c0_15 = arith.constant 0 : index
    %c0_16 = arith.constant 0 : index
    %18 = vector.load %arg7[%c0_15, %c0_16] : memref<20x18xf32, #tpu.memory_space<vmem>>, vector<20x18xf32>
    %19 = vector.extract_strided_slice %18 {offsets = [0, 0], sizes = [20, 16], strides = [1, 1]} : vector<20x18xf32> to vector<20x16xf32>
    %20 = vector.extract_strided_slice %18 {offsets = [0, 1], sizes = [20, 16], strides = [1, 1]} : vector<20x18xf32> to vector<20x16xf32>
    %21 = vector.extract_strided_slice %18 {offsets = [0, 2], sizes = [20, 16], strides = [1, 1]} : vector<20x18xf32> to vector<20x16xf32>
    %22 = tpu.concatenate %19, %20, %21 in 0 : vector<20x16xf32>, vector<20x16xf32>, vector<20x16xf32> -> vector<60x16xf32>
    %cst_17 = arith.constant dense<0.000000e+00> : vector<80x16xf32>
    %23 = tpu.matmul %1, %22, %cst_17 {dimension_numbers = #tpu.dot_dimension_numbers<[1], [0], [0], [1], [0, 0, 1, 1], [], []>} : vector<80x60xf32>, vector<60x16xf32>, vector<80x16xf32> -> vector<80x16xf32>
    %24 = vector.broadcast %3 : vector<80x1xf32> to vector<80x16xf32>
    %25 = arith.addf %23, %24 : vector<80x16xf32>
    %c0_18 = arith.constant 0 : index
    %c0_19 = arith.constant 0 : index
    %c0_20 = arith.constant 0 : index
    %26 = vector.load %arg6[%c0_18, %c0_19, %c0_20] : memref<2x80x16xf32, #tpu.memory_space<vmem>>, vector<1x80x16xf32>
    %27 = vector.shape_cast %26 : vector<1x80x16xf32> to vector<80x16xf32>
    %28 = vector.shape_cast %25 : vector<80x16xf32> to vector<1x80x16xf32>
    tpu.vector_store %arg6[%c0_18, %c0_19, %c0_20], %28 {strides = array<i32>} : memref<2x80x16xf32, #tpu.memory_space<vmem>>, vector<1x80x16xf32>,
    %c1 = arith.constant 1 : index
    %c0_21 = arith.constant 0 : index
    %c0_22 = arith.constant 0 : index
    %29 = vector.load %arg1[%c1, %c0_21, %c0_22] : memref<2x80x16xf32, #tpu.memory_space<vmem>>, vector<1x80x16xf32>
    %30 = vector.shape_cast %29 : vector<1x80x16xf32> to vector<80x16xf32>
    %31 = vector.extract_strided_slice %30 {offsets = [0, 0], sizes = [80, 14], strides = [1, 1]} : vector<80x16xf32> to vector<80x14xf32>
    %32 = vector.extract_strided_slice %30 {offsets = [0, 1], sizes = [80, 14], strides = [1, 1]} : vector<80x16xf32> to vector<80x14xf32>
    %33 = vector.extract_strided_slice %30 {offsets = [0, 2], sizes = [80, 14], strides = [1, 1]} : vector<80x16xf32> to vector<80x14xf32>
    %34 = tpu.concatenate %31, %32, %33 in 0 : vector<80x14xf32>, vector<80x14xf32>, vector<80x14xf32> -> vector<240x14xf32>
    %cst_23 = arith.constant dense<0.000000e+00> : vector<20x14xf32>
    %35 = tpu.matmul %0, %34, %cst_23 {dimension_numbers = #tpu.dot_dimension_numbers<[1], [0], [0], [1], [0, 0, 1, 1], [], []>} : vector<20x240xf32>, vector<240x14xf32>, vector<20x14xf32> -> vector<20x14xf32>
    %36 = vector.broadcast %2 : vector<20x1xf32> to vector<20x14xf32>
    %37 = arith.addf %35, %36 : vector<20x14xf32>
    %cst_24 = arith.constant 0.000000e+00 : f32
    %38 = vector.broadcast %cst_24 : f32 to vector<20x14xf32>
    %39 = arith.maximumf %37, %38 : vector<20x14xf32>
    %c0_25 = arith.constant 0 : index
    %c2_26 = arith.constant 2 : index
    %40 = vector.load %arg7[%c0_25, %c2_26] : memref<20x18xf32, #tpu.memory_space<vmem>>, vector<20x14xf32>
    tpu.vector_store %arg7[%c0_25, %c2_26], %39 {strides = array<i32>} : memref<20x18xf32, #tpu.memory_space<vmem>>, vector<20x14xf32>,
    %c0_27 = arith.constant 0 : index
    %c0_28 = arith.constant 0 : index
    %41 = vector.load %arg7[%c0_27, %c0_28] : memref<20x18xf32, #tpu.memory_space<vmem>>, vector<20x18xf32>
    %42 = vector.extract_strided_slice %41 {offsets = [0, 0], sizes = [20, 16], strides = [1, 1]} : vector<20x18xf32> to vector<20x16xf32>
    %43 = vector.extract_strided_slice %41 {offsets = [0, 1], sizes = [20, 16], strides = [1, 1]} : vector<20x18xf32> to vector<20x16xf32>
    %44 = vector.extract_strided_slice %41 {offsets = [0, 2], sizes = [20, 16], strides = [1, 1]} : vector<20x18xf32> to vector<20x16xf32>
    %45 = tpu.concatenate %42, %43, %44 in 0 : vector<20x16xf32>, vector<20x16xf32>, vector<20x16xf32> -> vector<60x16xf32>
    %cst_29 = arith.constant dense<0.000000e+00> : vector<80x16xf32>
    %46 = tpu.matmul %1, %45, %cst_29 {dimension_numbers = #tpu.dot_dimension_numbers<[1], [0], [0], [1], [0, 0, 1, 1], [], []>} : vector<80x60xf32>, vector<60x16xf32>, vector<80x16xf32> -> vector<80x16xf32>
    %47 = vector.broadcast %3 : vector<80x1xf32> to vector<80x16xf32>
    %48 = arith.addf %46, %47 : vector<80x16xf32>
    %c1_30 = arith.constant 1 : index
    %c0_31 = arith.constant 0 : index
    %c0_32 = arith.constant 0 : index
    %49 = vector.load %arg6[%c1_30, %c0_31, %c0_32] : memref<2x80x16xf32, #tpu.memory_space<vmem>>, vector<1x80x16xf32>
    %50 = vector.shape_cast %49 : vector<1x80x16xf32> to vector<80x16xf32>
    %51 = vector.shape_cast %48 : vector<80x16xf32> to vector<1x80x16xf32>
    tpu.vector_store %arg6[%c1_30, %c0_31, %c0_32], %51 {strides = array<i32>} : memref<2x80x16xf32, #tpu.memory_space<vmem>>, vector<1x80x16xf32>,
    return
  }
  func.func @transform_0(%arg0: i32) -> (i32, i32, i32) {
    %c0_i32 = arith.constant 0 : i32
    %c0_i32_0 = arith.constant 0 : i32
    %c0_i32_1 = arith.constant 0 : i32
    return %arg0, %c0_i32, %c0_i32_0 : i32, i32, i32
  }
  func.func @transform_1(%arg0: i32) -> (i32, i32) {
    %c0_i32 = arith.constant 0 : i32
    %c0_i32_0 = arith.constant 0 : i32
    %c0_i32_1 = arith.constant 0 : i32
    return %c0_i32, %c0_i32_0 : i32, i32
  }
  func.func @transform_2(%arg0: i32) -> (i32, i32) {
    %c0_i32 = arith.constant 0 : i32
    %c0_i32_0 = arith.constant 0 : i32
    %c0_i32_1 = arith.constant 0 : i32
    return %c0_i32, %c0_i32_0 : i32, i32
  }
  func.func @transform_3(%arg0: i32) -> (i32, i32) {
    %c0_i32 = arith.constant 0 : i32
    %c0_i32_0 = arith.constant 0 : i32
    %c0_i32_1 = arith.constant 0 : i32
    return %c0_i32, %c0_i32_0 : i32, i32
  }
  func.func @transform_4(%arg0: i32) -> (i32, i32) {
    %c0_i32 = arith.constant 0 : i32
    %c0_i32_0 = arith.constant 0 : i32
    %c0_i32_1 = arith.constant 0 : i32
    return %c0_i32, %c0_i32_0 : i32, i32
  }
  func.func @transform_5(%arg0: i32) -> (i32, i32, i32) {
    %c0_i32 = arith.constant 0 : i32
    %c0_i32_0 = arith.constant 0 : i32
    %c0_i32_1 = arith.constant 0 : i32
    return %arg0, %c0_i32, %c0_i32_0 : i32, i32, i32
  }
}

</mosaic_0001>

<llo_original>
// kernel: tpu_custom_call.1
$region0: #{tpu_custom_call.1}
  #allocation0 [shape = 'u32[]', space=smem, size = 0x4, offset = 0x4, fixed_abs, tag = 'smem constant byte address 0x4 - core index']
  #allocation1 [shape = 'u32[72,128]{1,0:T(1,128)}', space=vmem, size = 0x9000, scoped, tag = 'internal scratch']
  #allocation2 [shape = 'f32[20,18]{1,0:T(8,128)}', space=vmem, size = 0x3000, scoped, tag = 'scratch operand']
  %s0 = inlined_call_operand.vmem [shape: f32[2,80,16], index: 0, kind: input, shape index: {}]
  %s1 = inlined_call_operand.vmem [shape: f32[20,240], index: 1, kind: input, shape index: {}]
  %s2 = inlined_call_operand.vmem [shape: f32[20,1], index: 2, kind: input, shape index: {}]
  %s3 = inlined_call_operand.vmem [shape: f32[80,60], index: 3, kind: input, shape index: {}]
  %s4 = inlined_call_operand.vmem [shape: f32[80,1], index: 4, kind: input, shape index: {}]
  %s5 = inlined_call_operand.vmem [shape: f32[2,80,16], index: 5, kind: output, shape index: {}]
  %s6 = sld [smem:[#allocation0]]
  $region30: #{tpu_custom_call.1} parent=0
    _
  %s8 = ssub.s32 1, %s6
  %s9 = scalar_select 0, %s8, %s6
  // Predicated region
  $region2: #{tpu_custom_call.1} parent=0 // pred_check
    _
  $region3: #{tpu_custom_call.1} parent=0 // pred_check_branch
    %11 = sbr.rel (0) target = $region5
  $region4: #{tpu_custom_call.1} parent=0 // pred_region
    _
  $region5: #{tpu_custom_call.1} parent=0 // pred_fallthru
    _
  // Predicated region
  $region6: #{tpu_custom_call.1} parent=0 // pred_check
    _
  $region7: #{tpu_custom_call.1} parent=0 // pred_check_branch
    %13 = sbr.rel (0) target = $region9
  $region8: #{tpu_custom_call.1} parent=0 // pred_region
    _
  $region9: #{tpu_custom_call.1} parent=0 // pred_fallthru
    _
  // Predicated region
  $region10: #{tpu_custom_call.1} parent=0 // pred_check
    _
  $region11: #{tpu_custom_call.1} parent=0 // pred_check_branch
    %15 = sbr.rel (0) target = $region13
  $region12: #{tpu_custom_call.1} parent=0 // pred_region
    _
  $region13: #{tpu_custom_call.1} parent=0 // pred_fallthru
    _
  // Predicated region
  $region14: #{tpu_custom_call.1} parent=0 // pred_check
    _
  $region15: #{tpu_custom_call.1} parent=0 // pred_check_branch
    %17 = sbr.rel (0) target = $region17
  $region16: #{tpu_custom_call.1} parent=0 // pred_region
    _
  $region17: #{tpu_custom_call.1} parent=0 // pred_fallthru
    _
  // Predicated region
  $region18: #{tpu_custom_call.1} parent=0 // pred_check
    _
  $region19: #{tpu_custom_call.1} parent=0 // pred_check_branch
    %19 = sbr.rel (0) target = $region21
  $region20: #{tpu_custom_call.1} parent=0 // pred_region
    _
  $region21: #{tpu_custom_call.1} parent=0 // pred_fallthru
    _
  %v20 = vld [vmem:[%s1] sm:$0xff]
  %v21 = vld [vmem:[%s1 + $0x8] sm:$0xff]
  %v22 = vld [vmem:[%s1 + $0x10] sm:$0xff]
  %v23 = vld [vmem:[%s1 + $0x18] sm:$0xff]
  %v24 = vld [vmem:[%s1 + $0x20] sm:$0xf]
  %v25 = vld [vmem:[%s1 + $0x28] sm:$0xf]
  %v26 = vld [vmem:[%s3] sm:$0xff]
  %v27 = vld [vmem:[%s3 + $0x8] sm:$0xff]
  %v28 = vld [vmem:[%s3 + $0x10] sm:$0xff]
  %v29 = vld [vmem:[%s3 + $0x18] sm:$0xff]
  %v30 = vld [vmem:[%s3 + $0x20] sm:$0xff]
  %v31 = vld [vmem:[%s3 + $0x28] sm:$0xff]
  %v32 = vld [vmem:[%s3 + $0x30] sm:$0xff]
  %v33 = vld [vmem:[%s3 + $0x38] sm:$0xff]
  %v34 = vld [vmem:[%s3 + $0x40] sm:$0xff]
  %v35 = vld [vmem:[%s3 + $0x48] sm:$0xff]
  %v36 = vld [vmem:[%s2] sm:$0xff]
  %v37 = vld [vmem:[%s2 + $0x8] sm:$0xff]
  %v38 = vld [vmem:[%s2 + $0x10] sm:$0xf]
  %v39 = vld [vmem:[%s4] sm:$0xff]
  %v40 = vld [vmem:[%s4 + $0x8] sm:$0xff]
  %v41 = vld [vmem:[%s4 + $0x10] sm:$0xff]
  %v42 = vld [vmem:[%s4 + $0x18] sm:$0xff]
  %v43 = vld [vmem:[%s4 + $0x20] sm:$0xff]
  %v44 = vld [vmem:[%s4 + $0x28] sm:$0xff]
  %v45 = vld [vmem:[%s4 + $0x30] sm:$0xff]
  %v46 = vld [vmem:[%s4 + $0x38] sm:$0xff]
  %v47 = vld [vmem:[%s4 + $0x40] sm:$0xff]
  %v48 = vld [vmem:[%s4 + $0x48] sm:$0xff]
  %vm49 = vcmask 146432
  %50 = vst.msk [vmem:[#allocation2] sm:$0xff] %vm49, 0.0
  %51 = vst.msk [vmem:[#allocation2 + $0x8] sm:$0xff] %vm49, 0.0
  %vm52 = vcmask 142336
  %53 = vst.msk [vmem:[#allocation2 + $0x10] sm:$0xf] %vm52, 0.0
  %v54 = vld [vmem:[%s0] sm:$0xff]
  %v55 = vld [vmem:[%s0 + $0x8] sm:$0xff]
  %v56 = vld [vmem:[%s0 + $0x10] sm:$0xff]
  %v57 = vld [vmem:[%s0 + $0x18] sm:$0xff]
  %v58 = vld [vmem:[%s0 + $0x20] sm:$0xff]
  %v59 = vld [vmem:[%s0 + $0x28] sm:$0xff]
  %v60 = vld [vmem:[%s0 + $0x30] sm:$0xff]
  %v61 = vld [vmem:[%s0 + $0x38] sm:$0xff]
  %v62 = vld [vmem:[%s0 + $0x40] sm:$0xff]
  %v63 = vld [vmem:[%s0 + $0x48] sm:$0xff]
  %74 = vrot.lane.b32.xlu0 %v54, 127
  %v75 = vpop.permute.xlu0 %74
  %76 = vrot.lane.b32.xlu0 %v55, 127
  %v77 = vpop.permute.xlu0 %76
  %78 = vrot.lane.b32.xlu0 %v56, 127
  %v79 = vpop.permute.xlu0 %78
  %80 = vrot.lane.b32.xlu0 %v57, 127
  %v81 = vpop.permute.xlu0 %80
  %82 = vrot.lane.b32.xlu0 %v58, 127
  %v83 = vpop.permute.xlu0 %82
  %84 = vrot.lane.b32.xlu0 %v59, 127
  %v85 = vpop.permute.xlu0 %84
  %86 = vrot.lane.b32.xlu0 %v60, 127
  %v87 = vpop.permute.xlu0 %86
  %88 = vrot.lane.b32.xlu0 %v61, 127
  %v89 = vpop.permute.xlu0 %88
  %90 = vrot.lane.b32.xlu0 %v62, 127
  %v91 = vpop.permute.xlu0 %90
  %92 = vrot.lane.b32.xlu0 %v63, 127
  %v93 = vpop.permute.xlu0 %92
  %104 = vrot.lane.b32.xlu0 %v54, 126
  %v105 = vpop.permute.xlu0 %104
  %106 = vrot.lane.b32.xlu0 %v55, 126
  %v107 = vpop.permute.xlu0 %106
  %108 = vrot.lane.b32.xlu0 %v56, 126
  %v109 = vpop.permute.xlu0 %108
  %110 = vrot.lane.b32.xlu0 %v57, 126
  %v111 = vpop.permute.xlu0 %110
  %112 = vrot.lane.b32.xlu0 %v58, 126
  %v113 = vpop.permute.xlu0 %112
  %114 = vrot.lane.b32.xlu0 %v59, 126
  %v115 = vpop.permute.xlu0 %114
  %116 = vrot.lane.b32.xlu0 %v60, 126
  %v117 = vpop.permute.xlu0 %116
  %118 = vrot.lane.b32.xlu0 %v61, 126
  %v119 = vpop.permute.xlu0 %118
  %120 = vrot.lane.b32.xlu0 %v62, 126
  %v121 = vpop.permute.xlu0 %120
  %122 = vrot.lane.b32.xlu0 %v63, 126
  %v123 = vpop.permute.xlu0 %122
  %135 = vset.pattern.permute.xlu0 0
  %136 = vperm.xlu0 %135, %v36
  %v137 = vpop.permute.xlu0 %136
  %140 = vset.pattern.permute.xlu0 0
  %141 = vperm.xlu0 %140, %v37
  %v142 = vpop.permute.xlu0 %141
  %145 = vset.pattern.permute.xlu0 0
  %146 = vperm.xlu0 %145, %v38
  %v147 = vpop.permute.xlu0 %146
  %vm149 = vcmask 916480
  %v151 = vsel %vm149, %v21, 0
  %v154 = vsel %vm149, %v23, 0
  %v157 = vsel %vm149, %v25, 0
  %159 = vmatpush.msra.mxu0 %v85
  %160 = vmatpush.msra.mxu0 %v83
  %161 = vmatpush.msra.mxu0 %v81
  %162 = vmatpush.msra.mxu0 %v79
  %163 = vmatpush.msra.mxu0 %v77
  %164 = vmatpush.msra.mxu0 %v75
  %165 = vmatpush.msra.mxu0 %v63
  %166 = vmatpush.msra.mxu0 %v62
  %167 = vmatpush.msra.mxu0 %v61
  %168 = vmatpush.msra.mxu0 %v60
  %169 = vmatpush.msra.mxu0 %v59
  %170 = vmatpush.msra.mxu0 %v58
  %171 = vmatpush.msra.mxu0 %v57
  %172 = vmatpush.msra.mxu0 %v56
  %173 = vmatpush.msra.mxu0 %v55
  %174 = vmatpush.msra.mxu0 %v54
  %175 = vmatmul.f32.gmra.mxu0 %v20
  %v176 = vpop.f32.mrf.mxu0
  %v177 = vadd.f32 %v137, %v176
  %178 = vmatmul.f32.gmra.mxu0 %v22
  %v179 = vpop.f32.mrf.mxu0
  %v180 = vadd.f32 %v142, %v179
  %181 = vmatmul.f32.gmra.mxu0 %v24
  %v182 = vpop.f32.mrf.mxu0
  %v183 = vadd.f32 %v147, %v182
  %184 = vdwg.mxu0
  %185 = vmatpush.msra.mxu0 0.0
  %186 = vmatpush.msra.mxu0 0.0
  %187 = vmatpush.msra.mxu0 %v123
  %188 = vmatpush.msra.mxu0 %v121
  %189 = vmatpush.msra.mxu0 %v119
  %190 = vmatpush.msra.mxu0 %v117
  %191 = vmatpush.msra.mxu0 %v115
  %192 = vmatpush.msra.mxu0 %v113
  %193 = vmatpush.msra.mxu0 %v111
  %194 = vmatpush.msra.mxu0 %v109
  %195 = vmatpush.msra.mxu0 %v107
  %196 = vmatpush.msra.mxu0 %v105
  %197 = vmatpush.msra.mxu0 %v93
  %198 = vmatpush.msra.mxu0 %v91
  %199 = vmatpush.msra.mxu0 %v89
  %200 = vmatpush.msra.mxu0 %v87
  %201 = vmatmul.f32.gmra.mxu0 %v151
  %v202 = vpop.f32.mrf.mxu0
  %v203 = vadd.f32 %v177, %v202
  %204 = vmatmul.f32.gmra.mxu0 %v154
  %v205 = vpop.f32.mrf.mxu0
  %v206 = vadd.f32 %v180, %v205
  %207 = vmatmul.f32.gmra.mxu0 %v157
  %v208 = vpop.f32.mrf.mxu0
  %v209 = vadd.f32 %v183, %v208
  %210 = vdwg.mxu0
  %v211 = vmax.f32 %v203, 0.0
  %v212 = vmax.f32 %v206, 0.0
  %v213 = vmax.f32 %v209, 0.0
  %217 = vrot.lane.b32.xlu0 %v211, 2
  %v218 = vpop.permute.xlu0 %217
  %219 = vrot.lane.b32.xlu0 %v212, 2
  %v220 = vpop.permute.xlu0 %219
  %221 = vrot.lane.b32.xlu0 %v213, 2
  %v222 = vpop.permute.xlu0 %221
  %vm226 = vcmask 130064
  %227 = vst.msk [vmem:[#allocation2] sm:$0xff] %vm226, %v218
  %228 = vst.msk [vmem:[#allocation2 + $0x8] sm:$0xff] %vm226, %v220
  %vm229 = vcmask 125968
  %230 = vst.msk [vmem:[#allocation2 + $0x10] sm:$0xf] %vm229, %v222
  %v231 = vld [vmem:[#allocation2] sm:$0xff]
  %v232 = vld [vmem:[#allocation2 + $0x8] sm:$0xff]
  %v233 = vld [vmem:[#allocation2 + $0x10] sm:$0xf]
  %vm237 = vcmask 1043456
  %v238 = vrot.slane %v231, 4
  %v239 = vrot.slane %v232, 4
  %v240 = vsel %vm237, %v238, %v239
  %v241 = vrot.slane %v233, 4
  %v242 = vsel %vm237, %v239, %v241
  %243 = vrot.lane.b32.xlu0 %v238, 127
  %v244 = vpop.permute.xlu0 %243
  %245 = vrot.lane.b32.xlu0 %v240, 127
  %v246 = vpop.permute.xlu0 %245
  %247 = vrot.lane.b32.xlu0 %v242, 127
  %v248 = vpop.permute.xlu0 %247
  %252 = vrot.lane.b32.xlu0 %v231, 126
  %v253 = vpop.permute.xlu0 %252
  %254 = vrot.lane.b32.xlu0 %v232, 126
  %v255 = vpop.permute.xlu0 %254
  %256 = vrot.lane.b32.xlu0 %v233, 126
  %v257 = vpop.permute.xlu0 %256
  %v260 = vsel %vm237, %v233, %v244
  %262 = vset.pattern.permute.xlu0 0
  %263 = vperm.xlu0 %262, %v39
  %v264 = vpop.permute.xlu0 %263
  %267 = vset.pattern.permute.xlu0 0
  %268 = vperm.xlu0 %267, %v40
  %v269 = vpop.permute.xlu0 %268
  %272 = vset.pattern.permute.xlu0 0
  %273 = vperm.xlu0 %272, %v41
  %v274 = vpop.permute.xlu0 %273
  %277 = vset.pattern.permute.xlu0 0
  %278 = vperm.xlu0 %277, %v42
  %v279 = vpop.permute.xlu0 %278
  %282 = vset.pattern.permute.xlu0 0
  %283 = vperm.xlu0 %282, %v43
  %v284 = vpop.permute.xlu0 %283
  %287 = vset.pattern.permute.xlu0 0
  %288 = vperm.xlu0 %287, %v44
  %v289 = vpop.permute.xlu0 %288
  %292 = vset.pattern.permute.xlu0 0
  %293 = vperm.xlu0 %292, %v45
  %v294 = vpop.permute.xlu0 %293
  %297 = vset.pattern.permute.xlu0 0
  %298 = vperm.xlu0 %297, %v46
  %v299 = vpop.permute.xlu0 %298
  %302 = vset.pattern.permute.xlu0 0
  %303 = vperm.xlu0 %302, %v47
  %v304 = vpop.permute.xlu0 %303
  %307 = vset.pattern.permute.xlu0 0
  %308 = vperm.xlu0 %307, %v48
  %v309 = vpop.permute.xlu0 %308
  %vm311 = vcmask 490496
  %v313 = vsel %vm311, %v26, 0
  %v316 = vsel %vm311, %v27, 0
  %v319 = vsel %vm311, %v28, 0
  %v322 = vsel %vm311, %v29, 0
  %v325 = vsel %vm311, %v30, 0
  %v328 = vsel %vm311, %v31, 0
  %v331 = vsel %vm311, %v32, 0
  %v334 = vsel %vm311, %v33, 0
  %v337 = vsel %vm311, %v34, 0
  %v340 = vsel %vm311, %v35, 0
  %v342 = vsel %vm237, %v257, 0
  %344 = vmatpush.msra.mxu0 0.0
  %345 = vmatpush.msra.mxu0 0.0
  %346 = vmatpush.msra.mxu0 0.0
  %347 = vmatpush.msra.mxu0 0.0
  %348 = vmatpush.msra.mxu0 0.0
  %349 = vmatpush.msra.mxu0 0.0
  %350 = vmatpush.msra.mxu0 0.0
  %351 = vmatpush.msra.mxu0 0.0
  %352 = vmatpush.msra.mxu0 %v342
  %353 = vmatpush.msra.mxu0 %v255
  %354 = vmatpush.msra.mxu0 %v253
  %355 = vmatpush.msra.mxu0 %v248
  %356 = vmatpush.msra.mxu0 %v246
  %357 = vmatpush.msra.mxu0 %v260
  %358 = vmatpush.msra.mxu0 %v232
  %359 = vmatpush.msra.mxu0 %v231
  %360 = vmatmul.f32.gmra.mxu0 %v313
  %v361 = vpop.f32.mrf.mxu0
  %v362 = vadd.f32 %v264, %v361
  %363 = vmatmul.f32.gmra.mxu0 %v316
  %v364 = vpop.f32.mrf.mxu0
  %v365 = vadd.f32 %v269, %v364
  %366 = vmatmul.f32.gmra.mxu0 %v319
  %v367 = vpop.f32.mrf.mxu0
  %v368 = vadd.f32 %v274, %v367
  %369 = vmatmul.f32.gmra.mxu0 %v322
  %v370 = vpop.f32.mrf.mxu0
  %v371 = vadd.f32 %v279, %v370
  %372 = vmatmul.f32.gmra.mxu0 %v325
  %v373 = vpop.f32.mrf.mxu0
  %v374 = vadd.f32 %v284, %v373
  %375 = vmatmul.f32.gmra.mxu0 %v328
  %v376 = vpop.f32.mrf.mxu0
  %v377 = vadd.f32 %v289, %v376
  %378 = vmatmul.f32.gmra.mxu0 %v331
  %v379 = vpop.f32.mrf.mxu0
  %v380 = vadd.f32 %v294, %v379
  %381 = vmatmul.f32.gmra.mxu0 %v334
  %v382 = vpop.f32.mrf.mxu0
  %v383 = vadd.f32 %v299, %v382
  %384 = vmatmul.f32.gmra.mxu0 %v337
  %v385 = vpop.f32.mrf.mxu0
  %v386 = vadd.f32 %v304, %v385
  %387 = vmatmul.f32.gmra.mxu0 %v340
  %v388 = vpop.f32.mrf.mxu0
  %v389 = vadd.f32 %v309, %v388
  %390 = vdwg.mxu0
  %vm391 = vcmask 130048
  %392 = vst.msk [vmem:[%s5] sm:$0xff] %vm391, %v362
  %393 = vst.msk [vmem:[%s5 + $0x8] sm:$0xff] %vm391, %v365
  %394 = vst.msk [vmem:[%s5 + $0x10] sm:$0xff] %vm391, %v368
  %395 = vst.msk [vmem:[%s5 + $0x18] sm:$0xff] %vm391, %v371
  %396 = vst.msk [vmem:[%s5 + $0x20] sm:$0xff] %vm391, %v374
  %397 = vst.msk [vmem:[%s5 + $0x28] sm:$0xff] %vm391, %v377
  %398 = vst.msk [vmem:[%s5 + $0x30] sm:$0xff] %vm391, %v380
  %399 = vst.msk [vmem:[%s5 + $0x38] sm:$0xff] %vm391, %v383
  %400 = vst.msk [vmem:[%s5 + $0x40] sm:$0xff] %vm391, %v386
  %401 = vst.msk [vmem:[%s5 + $0x48] sm:$0xff] %vm391, %v389
  %s402 = scalar_lea.vmem %s0, 80
  %v403 = vld [vmem:[%s402] sm:$0xff]
  %v404 = vld [vmem:[%s402 + $0x8] sm:$0xff]
  %v405 = vld [vmem:[%s402 + $0x10] sm:$0xff]
  %v406 = vld [vmem:[%s402 + $0x18] sm:$0xff]
  %v407 = vld [vmem:[%s402 + $0x20] sm:$0xff]
  %v408 = vld [vmem:[%s402 + $0x28] sm:$0xff]
  %v409 = vld [vmem:[%s402 + $0x30] sm:$0xff]
  %v410 = vld [vmem:[%s402 + $0x38] sm:$0xff]
  %v411 = vld [vmem:[%s402 + $0x40] sm:$0xff]
  %v412 = vld [vmem:[%s402 + $0x48] sm:$0xff]
  %423 = vrot.lane.b32.xlu0 %v403, 127
  %v424 = vpop.permute.xlu0 %423
  %425 = vrot.lane.b32.xlu0 %v404, 127
  %v426 = vpop.permute.xlu0 %425
  %427 = vrot.lane.b32.xlu0 %v405, 127
  %v428 = vpop.permute.xlu0 %427
  %429 = vrot.lane.b32.xlu0 %v406, 127
  %v430 = vpop.permute.xlu0 %429
  %431 = vrot.lane.b32.xlu0 %v407, 127
  %v432 = vpop.permute.xlu0 %431
  %433 = vrot.lane.b32.xlu0 %v408, 127
  %v434 = vpop.permute.xlu0 %433
  %435 = vrot.lane.b32.xlu0 %v409, 127
  %v436 = vpop.permute.xlu0 %435
  %437 = vrot.lane.b32.xlu0 %v410, 127
  %v438 = vpop.permute.xlu0 %437
  %439 = vrot.lane.b32.xlu0 %v411, 127
  %v440 = vpop.permute.xlu0 %439
  %441 = vrot.lane.b32.xlu0 %v412, 127
  %v442 = vpop.permute.xlu0 %441
  %453 = vrot.lane.b32.xlu0 %v403, 126
  %v454 = vpop.permute.xlu0 %453
  %455 = vrot.lane.b32.xlu0 %v404, 126
  %v456 = vpop.permute.xlu0 %455
  %457 = vrot.lane.b32.xlu0 %v405, 126
  %v458 = vpop.permute.xlu0 %457
  %459 = vrot.lane.b32.xlu0 %v406, 126
  %v460 = vpop.permute.xlu0 %459
  %461 = vrot.lane.b32.xlu0 %v407, 126
  %v462 = vpop.permute.xlu0 %461
  %463 = vrot.lane.b32.xlu0 %v408, 126
  %v464 = vpop.permute.xlu0 %463
  %465 = vrot.lane.b32.xlu0 %v409, 126
  %v466 = vpop.permute.xlu0 %465
  %467 = vrot.lane.b32.xlu0 %v410, 126
  %v468 = vpop.permute.xlu0 %467
  %469 = vrot.lane.b32.xlu0 %v411, 126
  %v470 = vpop.permute.xlu0 %469
  %471 = vrot.lane.b32.xlu0 %v412, 126
  %v472 = vpop.permute.xlu0 %471
  %483 = vmatpush.msra.mxu0 %v434
  %484 = vmatpush.msra.mxu0 %v432
  %485 = vmatpush.msra.mxu0 %v430
  %486 = vmatpush.msra.mxu0 %v428
  %487 = vmatpush.msra.mxu0 %v426
  %488 = vmatpush.msra.mxu0 %v424
  %489 = vmatpush.msra.mxu0 %v412
  %490 = vmatpush.msra.mxu0 %v411
  %491 = vmatpush.msra.mxu0 %v410
  %492 = vmatpush.msra.mxu0 %v409
  %493 = vmatpush.msra.mxu0 %v408
  %494 = vmatpush.msra.mxu0 %v407
  %495 = vmatpush.msra.mxu0 %v406
  %496 = vmatpush.msra.mxu0 %v405
  %497 = vmatpush.msra.mxu0 %v404
  %498 = vmatpush.msra.mxu0 %v403
  %499 = vmatmul.f32.gmra.mxu0 %v20
  %v500 = vpop.f32.mrf.mxu0
  %v501 = vadd.f32 %v137, %v500
  %502 = vmatmul.f32.gmra.mxu0 %v22
  %v503 = vpop.f32.mrf.mxu0
  %v504 = vadd.f32 %v142, %v503
  %505 = vmatmul.f32.gmra.mxu0 %v24
  %v506 = vpop.f32.mrf.mxu0
  %v507 = vadd.f32 %v147, %v506
  %508 = vdwg.mxu0
  %509 = vmatpush.msra.mxu0 0.0
  %510 = vmatpush.msra.mxu0 0.0
  %511 = vmatpush.msra.mxu0 %v472
  %512 = vmatpush.msra.mxu0 %v470
  %513 = vmatpush.msra.mxu0 %v468
  %514 = vmatpush.msra.mxu0 %v466
  %515 = vmatpush.msra.mxu0 %v464
  %516 = vmatpush.msra.mxu0 %v462
  %517 = vmatpush.msra.mxu0 %v460
  %518 = vmatpush.msra.mxu0 %v458
  %519 = vmatpush.msra.mxu0 %v456
  %520 = vmatpush.msra.mxu0 %v454
  %521 = vmatpush.msra.mxu0 %v442
  %522 = vmatpush.msra.mxu0 %v440
  %523 = vmatpush.msra.mxu0 %v438
  %524 = vmatpush.msra.mxu0 %v436
  %525 = vmatmul.f32.gmra.mxu0 %v151
  %v526 = vpop.f32.mrf.mxu0
  %v527 = vadd.f32 %v501, %v526
  %528 = vmatmul.f32.gmra.mxu0 %v154
  %v529 = vpop.f32.mrf.mxu0
  %v530 = vadd.f32 %v504, %v529
  %531 = vmatmul.f32.gmra.mxu0 %v157
  %v532 = vpop.f32.mrf.mxu0
  %v533 = vadd.f32 %v507, %v532
  %534 = vdwg.mxu0
  %v535 = vmax.f32 %v527, 0.0
  %v536 = vmax.f32 %v530, 0.0
  %v537 = vmax.f32 %v533, 0.0
  %541 = vrot.lane.b32.xlu0 %v535, 2
  %v542 = vpop.permute.xlu0 %541
  %543 = vrot.lane.b32.xlu0 %v536, 2
  %v544 = vpop.permute.xlu0 %543
  %545 = vrot.lane.b32.xlu0 %v537, 2
  %v546 = vpop.permute.xlu0 %545
  %550 = vst.msk [vmem:[#allocation2] sm:$0xff] %vm226, %v542
  %551 = vst.msk [vmem:[#allocation2 + $0x8] sm:$0xff] %vm226, %v544
  %552 = vst.msk [vmem:[#allocation2 + $0x10] sm:$0xf] %vm229, %v546
  %v553 = vld [vmem:[#allocation2] sm:$0xff]
  %v554 = vld [vmem:[#allocation2 + $0x8] sm:$0xff]
  %v555 = vld [vmem:[#allocation2 + $0x10] sm:$0xf]
  %v559 = vrot.slane %v553, 4
  %v560 = vrot.slane %v554, 4
  %v561 = vsel %vm237, %v559, %v560
  %v562 = vrot.slane %v555, 4
  %v563 = vsel %vm237, %v560, %v562
  %564 = vrot.lane.b32.xlu0 %v559, 127
  %v565 = vpop.permute.xlu0 %564
  %566 = vrot.lane.b32.xlu0 %v561, 127
  %v567 = vpop.permute.xlu0 %566
  %568 = vrot.lane.b32.xlu0 %v563, 127
  %v569 = vpop.permute.xlu0 %568
  %573 = vrot.lane.b32.xlu0 %v553, 126
  %v574 = vpop.permute.xlu0 %573
  %575 = vrot.lane.b32.xlu0 %v554, 126
  %v576 = vpop.permute.xlu0 %575
  %577 = vrot.lane.b32.xlu0 %v555, 126
  %v578 = vpop.permute.xlu0 %577
  %v581 = vsel %vm237, %v555, %v565
  %v582 = vsel %vm237, %v578, 0
  %584 = vmatpush.msra.mxu0 0.0
  %585 = vmatpush.msra.mxu0 0.0
  %586 = vmatpush.msra.mxu0 0.0
  %587 = vmatpush.msra.mxu0 0.0
  %588 = vmatpush.msra.mxu0 0.0
  %589 = vmatpush.msra.mxu0 0.0
  %590 = vmatpush.msra.mxu0 0.0
  %591 = vmatpush.msra.mxu0 0.0
  %592 = vmatpush.msra.mxu0 %v582
  %593 = vmatpush.msra.mxu0 %v576
  %594 = vmatpush.msra.mxu0 %v574
  %595 = vmatpush.msra.mxu0 %v569
  %596 = vmatpush.msra.mxu0 %v567
  %597 = vmatpush.msra.mxu0 %v581
  %598 = vmatpush.msra.mxu0 %v554
  %599 = vmatpush.msra.mxu0 %v553
  %600 = vmatmul.f32.gmra.mxu0 %v313
  %v601 = vpop.f32.mrf.mxu0
  %v602 = vadd.f32 %v264, %v601
  %603 = vmatmul.f32.gmra.mxu0 %v316
  %v604 = vpop.f32.mrf.mxu0
  %v605 = vadd.f32 %v269, %v604
  %606 = vmatmul.f32.gmra.mxu0 %v319
  %v607 = vpop.f32.mrf.mxu0
  %v608 = vadd.f32 %v274, %v607
  %609 = vmatmul.f32.gmra.mxu0 %v322
  %v610 = vpop.f32.mrf.mxu0
  %v611 = vadd.f32 %v279, %v610
  %612 = vmatmul.f32.gmra.mxu0 %v325
  %v613 = vpop.f32.mrf.mxu0
  %v614 = vadd.f32 %v284, %v613
  %615 = vmatmul.f32.gmra.mxu0 %v328
  %v616 = vpop.f32.mrf.mxu0
  %v617 = vadd.f32 %v289, %v616
  %618 = vmatmul.f32.gmra.mxu0 %v331
  %v619 = vpop.f32.mrf.mxu0
  %v620 = vadd.f32 %v294, %v619
  %621 = vmatmul.f32.gmra.mxu0 %v334
  %v622 = vpop.f32.mrf.mxu0
  %v623 = vadd.f32 %v299, %v622
  %624 = vmatmul.f32.gmra.mxu0 %v337
  %v625 = vpop.f32.mrf.mxu0
  %v626 = vadd.f32 %v304, %v625
  %627 = vmatmul.f32.gmra.mxu0 %v340
  %v628 = vpop.f32.mrf.mxu0
  %v629 = vadd.f32 %v309, %v628
  %630 = vdwg.mxu0
  %s631 = scalar_lea.vmem %s5, 80
  %632 = vst.msk [vmem:[%s631] sm:$0xff] %vm391, %v602
  %633 = vst.msk [vmem:[%s631 + $0x8] sm:$0xff] %vm391, %v605
  %634 = vst.msk [vmem:[%s631 + $0x10] sm:$0xff] %vm391, %v608
  %635 = vst.msk [vmem:[%s631 + $0x18] sm:$0xff] %vm391, %v611
  %636 = vst.msk [vmem:[%s631 + $0x20] sm:$0xff] %vm391, %v614
  %637 = vst.msk [vmem:[%s631 + $0x28] sm:$0xff] %vm391, %v617
  %638 = vst.msk [vmem:[%s631 + $0x30] sm:$0xff] %vm391, %v620
  %639 = vst.msk [vmem:[%s631 + $0x38] sm:$0xff] %vm391, %v623
  %640 = vst.msk [vmem:[%s631 + $0x40] sm:$0xff] %vm391, %v626
  %641 = vst.msk [vmem:[%s631 + $0x48] sm:$0xff] %vm391, %v629
  // Predicated region
  $region22: #{tpu_custom_call.1} parent=0 // pred_check
    _
  $region23: #{tpu_custom_call.1} parent=0 // pred_check_branch
    %643 = sbr.rel (0) target = $region25
  $region24: #{tpu_custom_call.1} parent=0 // pred_region
    _
  $region25: #{tpu_custom_call.1} parent=0 // pred_fallthru
    _
  // Predicated region
  $region26: #{tpu_custom_call.1} parent=0 // pred_check
    _
  $region27: #{tpu_custom_call.1} parent=0 // pred_check_branch
    %645 = sbr.rel (0) target = $region29
  $region28: #{tpu_custom_call.1} parent=0 // pred_region
    _
  $region29: #{tpu_custom_call.1} parent=0 // pred_fallthru
    _

</llo_original>
